<compile_context>
chip_gen: v7x
topology: tpu7x:2x2x1
jax: 0.10.0
libtpu: 0.0.40
codegen_flags: <defaults>
</compile_context>

<pallas_src>
import functools

import jax
import jax.numpy as jnp
from jax.experimental import pallas as pl
from jax.experimental.pallas import tpu as pltpu


_TARGET_PROB_BYTES = 4 << 20  # ~4 MiB of prob per grid step


def _mse_pos_kernel(prob_ref, cost_ref, tgt_ref, sum_ref, cnt_ref, *, hw, ragged):
    t = pl.program_id(1)

    @pl.when(t == 0)
    def _():
        sum_ref[...] = jnp.zeros_like(sum_ref)
        cnt_ref[...] = jnp.zeros_like(cnt_ref)

    prob = prob_ref[...].astype(jnp.float32)     # (1, C, R, L)
    cost = cost_ref[...].astype(jnp.float32)     # (1, 1, R, L)
    tgt = tgt_ref[...].astype(jnp.float32)       # (1, 1, R, L)

    # Fold the channel broadcast into one dense reduction over the C axis
    # (leading axis -> C-1 elementwise VPU adds, no cross-lane work).
    psum = jnp.sum(prob, axis=1, keepdims=True)  # (1, 1, R, L)
    diff = cost - tgt
    sq = diff * diff
    mask = tgt > jnp.float32(0.0)                # (1, 1, R, L)

    if ragged:
        # Mask the overhanging part of the last tile (no host-side padding).
        _, _, rb, lw = tgt.shape                 # static Python ints
        rows = jax.lax.broadcasted_iota(jnp.int32, tgt.shape, 2)
        lanes = jax.lax.broadcasted_iota(jnp.int32, tgt.shape, 3)
        gidx = t * (rb * lw) + rows * lw + lanes # flattened HW index
        mask = jnp.logical_and(mask, gidx < hw)

    zero = jnp.float32(0.0)
    sum_ref[...] += jnp.where(mask, sq * psum, zero)
    cnt_ref[...] += jnp.where(mask, jnp.float32(1.0), zero)


def _vmem_limit_bytes():
    """Generation-aware VMEM limit with headroom below physical capacity."""
    try:
        cap = int(pltpu.get_tpu_info().vmem_capacity_bytes)
    except Exception:
        cap = 64 << 20  # assume the smallest (v7x) if the query is unavailable
    # 48 MiB on v7x (64 MiB physical), 64 MiB on v5e/v6e (128 MiB physical).
    return min((cap * 3) // 4, 64 << 20)


def _choose_rows(c, r_total, prob_bytes, side_bytes, budget):
    """Row-block R for the sublane-dense (1, C, R, 128) layout."""
    per_row_prob = c * 128 * prob_bytes
    per_row_side = 2 * 128 * side_bytes          # cost + tgt (double-buffered)
    per_row_acc = 2 * 128 * 4                    # resident f32 sum + cnt
    r_target = max(1, _TARGET_PROB_BYTES // per_row_prob)
    r_budget = max(1, budget // (2 * (per_row_prob + per_row_side) + per_row_acc))
    r = min(r_target, r_budget, r_total)
    if r >= r_total:
        return r_total                           # full extent (always legal)
    mult = 8 if prob_bytes >= 4 else 16          # bf16 packs 16 sublanes/vreg
    return max(mult, (r // mult) * mult)


def _choose_lanes(c, hw, prob_bytes, side_bytes, budget):
    """Lane-block T for the flat fallback (1, C, 1, T) layout."""
    if hw < 128:
        return hw                                # single full-extent block
    per_lane_prob = c * prob_bytes
    per_lane_side = 2 * side_bytes
    per_lane_acc = 2 * 4
    t_target = max(128, _TARGET_PROB_BYTES // per_lane_prob)
    t_budget = max(128, budget // (2 * (per_lane_prob + per_lane_side) + per_lane_acc))
    t = min(t_target, t_budget, (hw // 128) * 128)
    return max(128, (t // 128) * 128)


def mse_loss_pos_elements(output_prob, output_cost, targets):
    """output_prob: (N, C, H, W); output_cost, targets: (N, 1, H, W)."""
    N, C, H, W = output_prob.shape
    assert output_cost.shape == (N, 1, H, W)
    assert targets.shape == (N, 1, H, W)
    HW = H * W

    prob_bytes = jnp.dtype(output_prob.dtype).itemsize
    side_bytes = max(jnp.dtype(output_cost.dtype).itemsize,
                     jnp.dtype(targets.dtype).itemsize)
    vmem_limit = _vmem_limit_bytes()
    ws_budget = (vmem_limit * 3) // 4

    if HW % 128 == 0:
        # Sublane-dense layout; contiguous reshape -> no HBM copy.
        r_total = HW // 128
        r_blk = _choose_rows(C, r_total, prob_bytes, side_bytes, ws_budget)
        lanes = 128
        num_t = pl.cdiv(r_total, r_blk)
        prob = output_prob.reshape(N, C, r_total, 128)
        cost = output_cost.reshape(N, 1, r_total, 128)
        tgt = targets.reshape(N, 1, r_total, 128)
        in_map = lambda n, t: (n, 0, t, 0)       # tile along the row axis
    else:
        # Ragged-HW fallback: flat lane-dense layout, still no padding.
        r_blk = 1
        lanes = _choose_lanes(C, HW, prob_bytes, side_bytes, ws_budget)
        num_t = pl.cdiv(HW, lanes)
        prob = output_prob.reshape(N, C, 1, HW)
        cost = output_cost.reshape(N, 1, 1, HW)
        tgt = targets.reshape(N, 1, 1, HW)
        in_map = lambda n, t: (n, 0, 0, t)       # tile along the lane axis

    out_map = lambda n, t: (n, 0, 0, 0)          # resident per-sample slab
    ragged = (num_t * r_blk * lanes) != HW

    kernel = functools.partial(_mse_pos_kernel, hw=HW, ragged=ragged)

    sum_p, cnt_p = pl.pallas_call(
        kernel,
        out_shape=(jax.ShapeDtypeStruct((N, 1, r_blk, lanes), jnp.float32),
                   jax.ShapeDtypeStruct((N, 1, r_blk, lanes), jnp.float32)),
        grid_spec=pltpu.PrefetchScalarGridSpec(
            num_scalar_prefetch=0,
            grid=(N, num_t),
            in_specs=[
                pl.BlockSpec((1, C, r_blk, lanes), in_map),
                pl.BlockSpec((1, 1, r_blk, lanes), in_map),
                pl.BlockSpec((1, 1, r_blk, lanes), in_map),
            ],
            out_specs=[
                pl.BlockSpec((1, 1, r_blk, lanes), out_map),
                pl.BlockSpec((1, 1, r_blk, lanes), out_map),
            ],
        ),
        compiler_params=pltpu.CompilerParams(
            dimension_semantics=("parallel", "arbitrary"),
            vmem_limit_bytes=vmem_limit),
    )(prob, cost, tgt)

    total_sum = jnp.sum(sum_p)
    # Per-lane counts are small integers held exactly in f32; finish the sum
    # in int32 (exact), then multiply by C in float32 so count*C cannot
    # overflow int32 for huge inputs.
    pos_count = jnp.sum(cnt_p.astype(jnp.int32))
    total_cnt = pos_count.astype(jnp.float32) * jnp.float32(C)
    # NOTE: if no target is > 0 this is 0/0 = NaN, matching
    # torch.masked_select(...).mean() on an empty selection (intentional).
    return total_sum / total_cnt


def _reference(output_prob, output_cost, targets):
    shape = output_prob.shape
    cur = (jnp.broadcast_to(output_cost, shape)
           - jnp.broadcast_to(targets, shape)) ** 2
    weighted = cur * output_prob
    mask = jnp.broadcast_to(targets > 0.0, shape)
    return jnp.sum(jnp.where(mask, weighted, 0.0)) / jnp.sum(mask.astype(jnp.float32))


if __name__ == "__main__":
    key = jax.random.PRNGKey(0)
    k1, k2, k3 = jax.random.split(key, 3)

    # Main case: HW multiple of 128 -> sublane-dense path.
    N, C, H, W = 2, 4, 16, 16
    output_prob = jax.nn.softmax(
        jax.random.normal(k1, (N, C, H, W), dtype=jnp.float32), axis=1)
    output_cost = jax.random.uniform(k2, (N, 1, H, W), dtype=jnp.float32)
    targets = jax.random.normal(k3, (N, 1, H, W), dtype=jnp.float32)

    result = jax.block_until_ready(
        mse_loss_pos_elements(output_prob, output_cost, targets))
    expected = jax.block_until_ready(
        _reference(output_prob, output_cost, targets))
    assert jnp.allclose(result, expected, rtol=1e-5, atol=1e-6), (result, expected)

    # Ragged case: HW % 128 != 0 -> unpadded flat path with in-kernel masking.
    k4, k5, k6 = jax.random.split(jax.random.PRNGKey(1), 3)
    N2, C2, H2, W2 = 2, 3, 15, 15
    prob2 = jax.nn.softmax(
        jax.random.normal(k4, (N2, C2, H2, W2), dtype=jnp.float32), axis=1)
    cost2 = jax.random.uniform(k5, (N2, 1, H2, W2), dtype=jnp.float32)
    tgt2 = jax.random.normal(k6, (N2, 1, H2, W2), dtype=jnp.float32)

    result2 = jax.block_until_ready(mse_loss_pos_elements(prob2, cost2, tgt2))
    expected2 = jax.block_until_ready(_reference(prob2, cost2, tgt2))
    assert jnp.allclose(result2, expected2, rtol=1e-5, atol=1e-6), (result2, expected2)

    print("KERNEL_OK")
</pallas_src>

<mosaic_0001>
module attributes {stable_mosaic.version = 11 : i64} {
  func.func @_mse_pos_kernel(%arg0: i32, %arg1: i32, %arg2: memref<1x4x2x128xf32, #tpu.memory_space<vmem>>, %arg3: memref<1x1x2x128xf32, #tpu.memory_space<vmem>>, %arg4: memref<1x1x2x128xf32, #tpu.memory_space<vmem>>, %arg5: memref<1x1x2x128xf32, #tpu.memory_space<vmem>>, %arg6: memref<1x1x2x128xf32, #tpu.memory_space<vmem>>) attributes {dimension_semantics = [#tpu.dimension_semantics<parallel>, #tpu.dimension_semantics<arbitrary>], iteration_bounds = array<i64: 2, 1>, scalar_prefetch = 0 : i64, scratch_operands = 0 : i64, tpu.core_type = #tpu.core_type<tc>, window_params = [{transform_indices = @transform_0, window_bounds = array<i64: 1, 4, 2, 128>}, {transform_indices = @transform_1, window_bounds = array<i64: 1, 1, 2, 128>}, {transform_indices = @transform_2, window_bounds = array<i64: 1, 1, 2, 128>}, {transform_indices = @transform_3, window_bounds = array<i64: 1, 1, 2, 128>}, {transform_indices = @transform_4, window_bounds = array<i64: 1, 1, 2, 128>}]} {
    %c0_i32 = arith.constant 0 : i32
    %0 = arith.cmpi eq, %arg1, %c0_i32 : i32
    %1 = arith.extui %0 : i1 to i32
    %c0_i32_0 = arith.constant 0 : i32
    %2 = arith.cmpi ne, %1, %c0_i32_0 : i32
    scf.if %2 {
      %cst_32 = arith.constant 0.000000e+00 : f32
      %24 = vector.broadcast %cst_32 : f32 to vector<1x1x2x128xf32>
      %c0_33 = arith.constant 0 : index
      %c0_34 = arith.constant 0 : index
      %c0_35 = arith.constant 0 : index
      %c0_36 = arith.constant 0 : index
      %25 = vector.load %arg5[%c0_33, %c0_34, %c0_35, %c0_36] : memref<1x1x2x128xf32, #tpu.memory_space<vmem>>, vector<1x1x2x128xf32>
      tpu.vector_store %arg5[%c0_33, %c0_34, %c0_35, %c0_36], %24 {strides = array<i32>} : memref<1x1x2x128xf32, #tpu.memory_space<vmem>>, vector<1x1x2x128xf32>,
      %cst_37 = arith.constant 0.000000e+00 : f32
      %26 = vector.broadcast %cst_37 : f32 to vector<1x1x2x128xf32>
      %c0_38 = arith.constant 0 : index
      %c0_39 = arith.constant 0 : index
      %c0_40 = arith.constant 0 : index
      %c0_41 = arith.constant 0 : index
      %27 = vector.load %arg6[%c0_38, %c0_39, %c0_40, %c0_41] : memref<1x1x2x128xf32, #tpu.memory_space<vmem>>, vector<1x1x2x128xf32>
      tpu.vector_store %arg6[%c0_38, %c0_39, %c0_40, %c0_41], %26 {strides = array<i32>} : memref<1x1x2x128xf32, #tpu.memory_space<vmem>>, vector<1x1x2x128xf32>,
    } else {
    }
    %c0 = arith.constant 0 : index
    %c0_1 = arith.constant 0 : index
    %c0_2 = arith.constant 0 : index
    %c0_3 = arith.constant 0 : index
    %3 = vector.load %arg2[%c0, %c0_1, %c0_2, %c0_3] : memref<1x4x2x128xf32, #tpu.memory_space<vmem>>, vector<1x4x2x128xf32>
    %c0_4 = arith.constant 0 : index
    %c0_5 = arith.constant 0 : index
    %c0_6 = arith.constant 0 : index
    %c0_7 = arith.constant 0 : index
    %4 = vector.load %arg3[%c0_4, %c0_5, %c0_6, %c0_7] : memref<1x1x2x128xf32, #tpu.memory_space<vmem>>, vector<1x1x2x128xf32>
    %c0_8 = arith.constant 0 : index
    %c0_9 = arith.constant 0 : index
    %c0_10 = arith.constant 0 : index
    %c0_11 = arith.constant 0 : index
    %5 = vector.load %arg4[%c0_8, %c0_9, %c0_10, %c0_11] : memref<1x1x2x128xf32, #tpu.memory_space<vmem>>, vector<1x1x2x128xf32>
    %cst = arith.constant dense<0.000000e+00> : vector<1x2x128xf32>
    %6 = vector.multi_reduction <add>, %3, %cst [1] : vector<1x4x2x128xf32> to vector<1x2x128xf32>
    %7 = vector.shape_cast %6 : vector<1x2x128xf32> to vector<1x1x2x128xf32>
    %8 = arith.subf %4, %5 : vector<1x1x2x128xf32>
    %9 = arith.mulf %8, %8 : vector<1x1x2x128xf32>
    %cst_12 = arith.constant 0.000000e+00 : f32
    %10 = vector.broadcast %cst_12 : f32 to vector<1x1x2x128xf32>
    %11 = arith.cmpf ogt, %5, %10 : vector<1x1x2x128xf32>
    %c0_13 = arith.constant 0 : index
    %c0_14 = arith.constant 0 : index
    %c0_15 = arith.constant 0 : index
    %c0_16 = arith.constant 0 : index
    %12 = vector.load %arg5[%c0_13, %c0_14, %c0_15, %c0_16] : memref<1x1x2x128xf32, #tpu.memory_space<vmem>>, vector<1x1x2x128xf32>
    %13 = arith.mulf %9, %7 : vector<1x1x2x128xf32>
    %cst_17 = arith.constant 0.000000e+00 : f32
    %14 = vector.broadcast %cst_17 : f32 to vector<1x1x2x128xf32>
    %15 = arith.select %11, %13, %14 : vector<1x1x2x128xi1>, vector<1x1x2x128xf32>
    %16 = arith.addf %12, %15 : vector<1x1x2x128xf32>
    %c0_18 = arith.constant 0 : index
    %c0_19 = arith.constant 0 : index
    %c0_20 = arith.constant 0 : index
    %c0_21 = arith.constant 0 : index
    %17 = vector.load %arg5[%c0_18, %c0_19, %c0_20, %c0_21] : memref<1x1x2x128xf32, #tpu.memory_space<vmem>>, vector<1x1x2x128xf32>
    tpu.vector_store %arg5[%c0_18, %c0_19, %c0_20, %c0_21], %16 {strides = array<i32>} : memref<1x1x2x128xf32, #tpu.memory_space<vmem>>, vector<1x1x2x128xf32>,
    %c0_22 = arith.constant 0 : index
    %c0_23 = arith.constant 0 : index
    %c0_24 = arith.constant 0 : index
    %c0_25 = arith.constant 0 : index
    %18 = vector.load %arg6[%c0_22, %c0_23, %c0_24, %c0_25] : memref<1x1x2x128xf32, #tpu.memory_space<vmem>>, vector<1x1x2x128xf32>
    %cst_26 = arith.constant 1.000000e+00 : f32
    %cst_27 = arith.constant 0.000000e+00 : f32
    %19 = vector.broadcast %cst_26 : f32 to vector<1x1x2x128xf32>
    %20 = vector.broadcast %cst_27 : f32 to vector<1x1x2x128xf32>
    %21 = arith.select %11, %19, %20 : vector<1x1x2x128xi1>, vector<1x1x2x128xf32>
    %22 = arith.addf %18, %21 : vector<1x1x2x128xf32>
    %c0_28 = arith.constant 0 : index
    %c0_29 = arith.constant 0 : index
    %c0_30 = arith.constant 0 : index
    %c0_31 = arith.constant 0 : index
    %23 = vector.load %arg6[%c0_28, %c0_29, %c0_30, %c0_31] : memref<1x1x2x128xf32, #tpu.memory_space<vmem>>, vector<1x1x2x128xf32>
    tpu.vector_store %arg6[%c0_28, %c0_29, %c0_30, %c0_31], %22 {strides = array<i32>} : memref<1x1x2x128xf32, #tpu.memory_space<vmem>>, vector<1x1x2x128xf32>,
    return
  }
  func.func @transform_0(%arg0: i32, %arg1: i32) -> (i32, i32, i32, i32) {
    %c0_i32 = arith.constant 0 : i32
    %c0_i32_0 = arith.constant 0 : i32
    %c0_i32_1 = arith.constant 0 : i32
    return %arg0, %c0_i32, %arg1, %c0_i32_0 : i32, i32, i32, i32
  }
  func.func @transform_1(%arg0: i32, %arg1: i32) -> (i32, i32, i32, i32) {
    %c0_i32 = arith.constant 0 : i32
    %c0_i32_0 = arith.constant 0 : i32
    %c0_i32_1 = arith.constant 0 : i32
    return %arg0, %c0_i32, %arg1, %c0_i32_0 : i32, i32, i32, i32
  }
  func.func @transform_2(%arg0: i32, %arg1: i32) -> (i32, i32, i32, i32) {
    %c0_i32 = arith.constant 0 : i32
    %c0_i32_0 = arith.constant 0 : i32
    %c0_i32_1 = arith.constant 0 : i32
    return %arg0, %c0_i32, %arg1, %c0_i32_0 : i32, i32, i32, i32
  }
  func.func @transform_3(%arg0: i32, %arg1: i32) -> (i32, i32, i32, i32) {
    %c0_i32 = arith.constant 0 : i32
    %c0_i32_0 = arith.constant 0 : i32
    %c0_i32_1 = arith.constant 0 : i32
    %c0_i32_2 = arith.constant 0 : i32
    return %arg0, %c0_i32, %c0_i32_0, %c0_i32_1 : i32, i32, i32, i32
  }
  func.func @transform_4(%arg0: i32, %arg1: i32) -> (i32, i32, i32, i32) {
    %c0_i32 = arith.constant 0 : i32
    %c0_i32_0 = arith.constant 0 : i32
    %c0_i32_1 = arith.constant 0 : i32
    %c0_i32_2 = arith.constant 0 : i32
    return %arg0, %c0_i32, %c0_i32_0, %c0_i32_1 : i32, i32, i32, i32
  }
}

</mosaic_0001>

<llo_original>
// kernel: tpu_custom_call.1
$region0: #{tpu_custom_call.1}
  #allocation0 [shape = 'u32[]', space=smem, size = 0x4, offset = 0x4, fixed_abs, tag = 'smem constant byte address 0x4 - core index']
  #allocation1 [shape = 'u32[144,128]{1,0:T(1,128)}', space=vmem, size = 0x12000, scoped, tag = 'internal scratch']
  %s0 = inlined_call_operand.hbm [shape: f32[2,4,2,128], index: 0, kind: input, shape index: {}]
  %s1 = inlined_call_operand.hbm [shape: f32[2,1,2,128], index: 1, kind: input, shape index: {}]
  %s2 = inlined_call_operand.vmem [shape: f32[2,1,2,128], index: 2, kind: input, shape index: {}]
  %s3 = inlined_call_operand.hbm [shape: f32[2,1,2,128], index: 3, kind: output, shape index: {0}]
  %s4 = inlined_call_operand.hbm [shape: f32[2,1,2,128], index: 4, kind: output, shape index: {1}]
  %5 = xla_tuple %s3, %s4
  %s6 = sld [smem:[#allocation0]]
  $region65: #{tpu_custom_call.1} parent=0
    _
  %s8 = ssub.s32 1, %s6
  %s9 = scalar_select 0, %s8, %s6
  $region1: #{tpu_custom_call.1} parent=0
    #allocation2 [shape = 'u8[8192]{0}', space=vmem, size = 0x2000, scoped, tag = 'input window, operand 0']
    #allocation3 [shape = 's32[2]{0}', space=sflag, size = 0x8, scoped, tag = 'scoped memory for tpu_custom_call.1']
    #allocation4 [shape = 's32[2]{0}', space=sflag, size = 0x8, scoped, tag = 'scoped memory for tpu_custom_call.1']
    #allocation5 [shape = 'u8[2048]{0}', space=vmem, size = 0x800, scoped, tag = 'input window, operand 1']
    #allocation6 [shape = 's32[2]{0}', space=sflag, size = 0x8, scoped, tag = 'scoped memory for tpu_custom_call.1']
    #allocation7 [shape = 'u8[2048]{0}', space=vmem, size = 0x800, scoped, tag = 'output window, operand 0']
    #allocation8 [shape = 'u8[2048]{0}', space=vmem, size = 0x800, scoped, tag = 'output window, operand 1']
    #allocation9 [shape = 's32[2]{0}', space=sflag, size = 0x8, scoped, tag = 'scoped memory for tpu_custom_call.1']
    %10 = vsyncpa [#allocation3], 0
    %s11 = scalar_lea.sflag [#allocation3], 1
    %12 = vsyncpa %s11, 0
    %13 = vsyncpa [#allocation6], 0
    %s14 = scalar_lea.sflag [#allocation6], 1
    %15 = vsyncpa %s14, 0
    %16 = vsyncpa [#allocation4], 0
    %s17 = scalar_lea.sflag [#allocation4], 1
    %18 = vsyncpa %s17, 0
    %19 = vsyncpa [#allocation9], 0
    %s20 = scalar_lea.sflag [#allocation9], 1
    %21 = vsyncpa %s20, 0
    loop: start=0, step=1, limit=4
    $region2: #{tpu_custom_call.1} parent=1 // loop_pre_header
      _
    $region3: #{tpu_custom_call.1} parent=1 // loop_header
      %s23 = sphi 0, %s27
      %p24 = scmp.ge.s32.totalorder %s23, 4
      %s30 = sphi 0, %s42
      %s31 = sphi 0, %s38
      %s32 = sphi 0, %s30
      %s33 = sphi 0, %s31
      %s34 = sphi 0, %s32
      %s35 = sphi 0, %s33
      %s47 = sphi 0, %s49
      %s50 = sphi 0, %s47
      %s51 = sphi 0, %s50
      %s67 = sphi 0, %s51
      %s75 = sphi 0, %s77
      %s78 = sphi 0, %s75
      %s79 = sphi 0, %s78
      %s95 = sphi 0, %s79
      %s103 = sphi 0, %s105
      %s106 = sphi 0, %s103
      %s107 = sphi 0, %s106
      %s123 = sphi 0, %s107
      %s129 = sphi 0, %s131
      %s132 = sphi 0, %s129
      %s133 = sphi 0, %s132
      %s149 = sphi 0, %s133
      %s155 = sphi 0, %s157
      %s158 = sphi 0, %s155
      %s159 = sphi 0, %s158
      %s175 = sphi 0, %s159
    $region4: #{tpu_custom_call.1} parent=1 // loop_header_branch
      %26 = sbr.rel (%p24) target = $region8
    $region5: #{tpu_custom_call.1} parent=1 // loop_body
      %s28 = ssub.s32 %s23, 1
      %s29 = ssub.s32 %s23, 2
      %s36 = sadd.s32 1, %s31
      %p37 = scmp.ge.s32.totalorder %s36, 1
      %s38 = scalar_select %p37, 0, %s36
      %s39 = sadd.s32 1, %s30
      %s40 = scalar_select %p37, %s39, %s30
      %p41 = scmp.ge.s32.totalorder %s40, 2
      %s42 = scalar_select %p41, 0, %s40
      %s43 = ssub.s32 %s30, %s42
      %s44 = ssub.s32 %s31, %s38
      %s45 = sor.u32 %s43, %s44
      %p46 = scmp.eq.s32.totalorder %s45, 0
      %s48 = sadd.s32 %s47, 1
      %s49 = scalar_select %p46, %s47, %s48
      %p52 = pneg %p46
      %p53 = scmp.eq.s32.totalorder %s23, 1
      %p54 = por %p52, %p53
      %p55 = scmp.ne.s32.totalorder %s47, %s50
      %p56 = scmp.eq.s32.totalorder %s23, 0
      %p57 = por %p55, %p56
      %p58 = scmp.ne.s32.totalorder %s47, %s50
      %p59 = scmp.eq.s32.totalorder %s28, 1
      %p60 = por %p58, %p59
      %p61 = scmp.ne.s32.totalorder %s50, %s51
      %p62 = scmp.eq.s32.totalorder %s28, 0
      %p63 = por %p61, %p62
      %p64 = scmp.ne.s32.totalorder %s50, %s51
      %p65 = scmp.eq.s32.totalorder %s29, 1
      %p66 = por %p64, %p65
      %p68 = scmp.ne.s32.totalorder %s51, %s67
      %p69 = scmp.eq.s32.totalorder %s29, 0
      %p70 = por %p68, %p69
      %s71 = ssub.s32 %s30, %s42
      %s72 = ssub.s32 %s31, %s38
      %s73 = sor.u32 %s71, %s72
      %p74 = scmp.eq.s32.totalorder %s73, 0
      %s76 = sadd.s32 %s75, 1
      %s77 = scalar_select %p74, %s75, %s76
      %p80 = pneg %p74
      %p81 = scmp.eq.s32.totalorder %s23, 1
      %p82 = por %p80, %p81
      %p83 = scmp.ne.s32.totalorder %s75, %s78
      %p84 = scmp.eq.s32.totalorder %s23, 0
      %p85 = por %p83, %p84
      %p86 = scmp.ne.s32.totalorder %s75, %s78
      %p87 = scmp.eq.s32.totalorder %s28, 1
      %p88 = por %p86, %p87
      %p89 = scmp.ne.s32.totalorder %s78, %s79
      %p90 = scmp.eq.s32.totalorder %s28, 0
      %p91 = por %p89, %p90
      %p92 = scmp.ne.s32.totalorder %s78, %s79
      %p93 = scmp.eq.s32.totalorder %s29, 1
      %p94 = por %p92, %p93
      %p96 = scmp.ne.s32.totalorder %s79, %s95
      %p97 = scmp.eq.s32.totalorder %s29, 0
      %p98 = por %p96, %p97
      %s99 = ssub.s32 %s30, %s42
      %s100 = ssub.s32 %s31, %s38
      %s101 = sor.u32 %s99, %s100
      %p102 = scmp.eq.s32.totalorder %s101, 0
      %s104 = sadd.s32 %s103, 1
      %s105 = scalar_select %p102, %s103, %s104
      %p108 = pneg %p102
      %p109 = scmp.eq.s32.totalorder %s23, 1
      %p110 = por %p108, %p109
      %p111 = scmp.ne.s32.totalorder %s103, %s106
      %p112 = scmp.eq.s32.totalorder %s23, 0
      %p113 = por %p111, %p112
      %p114 = scmp.ne.s32.totalorder %s103, %s106
      %p115 = scmp.eq.s32.totalorder %s28, 1
      %p116 = por %p114, %p115
      %p117 = scmp.ne.s32.totalorder %s106, %s107
      %p118 = scmp.eq.s32.totalorder %s28, 0
      %p119 = por %p117, %p118
      %p120 = scmp.ne.s32.totalorder %s106, %s107
      %p121 = scmp.eq.s32.totalorder %s29, 1
      %p122 = por %p120, %p121
      %p124 = scmp.ne.s32.totalorder %s107, %s123
      %p125 = scmp.eq.s32.totalorder %s29, 0
      %p126 = por %p124, %p125
      %s127 = ssub.s32 %s30, %s42
      %p128 = scmp.eq.s32.totalorder %s127, 0
      %s130 = sadd.s32 %s129, 1
      %s131 = scalar_select %p128, %s129, %s130
      %p134 = pneg %p128
      %p135 = scmp.eq.s32.totalorder %s23, 1
      %p136 = por %p134, %p135
      %p137 = scmp.ne.s32.totalorder %s129, %s132
      %p138 = scmp.eq.s32.totalorder %s23, 0
      %p139 = por %p137, %p138
      %p140 = scmp.ne.s32.totalorder %s129, %s132
      %p141 = scmp.eq.s32.totalorder %s28, 1
      %p142 = por %p140, %p141
      %p143 = scmp.ne.s32.totalorder %s132, %s133
      %p144 = scmp.eq.s32.totalorder %s28, 0
      %p145 = por %p143, %p144
      %p146 = scmp.ne.s32.totalorder %s132, %s133
      %p147 = scmp.eq.s32.totalorder %s29, 1
      %p148 = por %p146, %p147
      %p150 = scmp.ne.s32.totalorder %s133, %s149
      %p151 = scmp.eq.s32.totalorder %s29, 0
      %p152 = por %p150, %p151
      %s153 = ssub.s32 %s30, %s42
      %p154 = scmp.eq.s32.totalorder %s153, 0
      %s156 = sadd.s32 %s155, 1
      %s157 = scalar_select %p154, %s155, %s156
      %p160 = pneg %p154
      %p161 = scmp.eq.s32.totalorder %s23, 1
      %p162 = por %p160, %p161
      %p163 = scmp.ne.s32.totalorder %s155, %s158
      %p164 = scmp.eq.s32.totalorder %s23, 0
      %p165 = por %p163, %p164
      %p166 = scmp.ne.s32.totalorder %s155, %s158
      %p167 = scmp.eq.s32.totalorder %s28, 1
      %p168 = por %p166, %p167
      %p169 = scmp.ne.s32.totalorder %s158, %s159
      %p170 = scmp.eq.s32.totalorder %s28, 0
      %p171 = por %p169, %p170
      %p172 = scmp.ne.s32.totalorder %s158, %s159
      %p173 = scmp.eq.s32.totalorder %s29, 1
      %p174 = por %p172, %p173
      %p176 = scmp.ne.s32.totalorder %s159, %s175
      %p177 = scmp.eq.s32.totalorder %s29, 0
      %p178 = por %p176, %p177
      %p179 = scmp.le.s32.totalorder 1, %s23
      %p180 = scmp.lt.s32.totalorder %s23, 3
      %p181 = pnand %p179, %p180
      %p182 = pneg %p181
      // Predicated region
      $region9: #{tpu_custom_call.1} parent=5 // pred_check
        _
      $region10: #{tpu_custom_call.1} parent=5 // pred_check_branch
        %184 = sbr.rel (%p181) target = $region12
      $region11: #{tpu_custom_call.1} parent=5 // pred_region
        %s185 = ssub.s32 %s23, 1
      $region12: #{tpu_custom_call.1} parent=5 // pred_fallthru
        _
      %p186 = scmp.lt.s32.totalorder %s23, 2
      // Predicated region
      $region13: #{tpu_custom_call.1} parent=5 // pred_check
        %p187 = pneg %p186
      $region14: #{tpu_custom_call.1} parent=5 // pred_check_branch
        %189 = sbr.rel (%p187) target = $region16
      $region15: #{tpu_custom_call.1} parent=5 // pred_region
        // Predicated region
        $region17: #{tpu_custom_call.1} parent=15 // pred_check
          %p190 = pneg %p57
        $region18: #{tpu_custom_call.1} parent=15 // pred_check_branch
          %192 = sbr.rel (%p190) target = $region20
        $region19: #{tpu_custom_call.1} parent=15 // pred_region
          %s193 = sand.u32 %s47, 1
          %s194 = scalar_lea.sflag [#allocation3], %s193
          %s195 = sand.u32 %s47, 1
          %s196 = smul.addr %s195, 8
          %s197 = scalar_lea.vmem [#allocation2], %s196
          %s199 = ssub.s32 128, 128
          %200 = vsyncadd %s194, %s199
          %s201 = smul.addr %s30, 4
          %s202 = sadd.s32 %s31, %s201
          %s203 = smul.addr %s202, 32
          %s204 = scalar_lea.hbm %s0, %s203
          %s205 = sshll.u32 %s197, 4
          %s206 = int_to_ptr.vmem [resolvable:$true] %s205
          %211 = dma.hbm_to_vmem [thread:$0]  %s204, 128, %s206, %s194, 32, 32, 2
        $region20: #{tpu_custom_call.1} parent=15 // pred_fallthru
          _
        // Predicated region
        $region21: #{tpu_custom_call.1} parent=15 // pred_check
          %p212 = pneg %p85
        $region22: #{tpu_custom_call.1} parent=15 // pred_check_branch
          %214 = sbr.rel (%p212) target = $region24
        $region23: #{tpu_custom_call.1} parent=15 // pred_region
          %s215 = sand.u32 %s75, 1
          %s216 = scalar_lea.sflag [#allocation6], %s215
          %s217 = sand.u32 %s75, 1
          %s218 = smul.addr %s217, 2
          %s219 = scalar_lea.vmem [#allocation5], %s218
          %s221 = ssub.s32 32, 32
          %222 = vsyncadd %s216, %s221
          %s223 = sadd.s32 %s31, %s30
          %s224 = smul.addr %s223, 32
          %s225 = scalar_lea.hbm %s1, %s224
          %s227 = sshll.u32 %s219, 4
          %s228 = int_to_ptr.vmem [resolvable:$true] %s227
          %230 = dma.hbm_to_vmem [thread:$0]  %s225, 32, %s228, %s216
        $region24: #{tpu_custom_call.1} parent=15 // pred_fallthru
          _
        // Predicated region
        $region25: #{tpu_custom_call.1} parent=15 // pred_check
          %p231 = pneg %p113
        $region26: #{tpu_custom_call.1} parent=15 // pred_check_branch
          %233 = sbr.rel (%p231) target = $region28
        $region27: #{tpu_custom_call.1} parent=15 // pred_region
          %p234 = scmp.lt.s32.totalorder %s30, 1
          %s235 = scalar_select %p234, %s30, 1
          %p236 = scmp.lt.s32.totalorder %s31, 0
          %s237 = scalar_select %p236, %s31, 0
          %s238 = sadd.s32 %s237, %s235
          %s239 = smul.addr %s238, 2
          %s240 = scalar_lea.vmem %s2, %s239
        $region28: #{tpu_custom_call.1} parent=15 // pred_fallthru
          _
      $region16: #{tpu_custom_call.1} parent=5 // pred_fallthru
        _
      %p241 = scmp.le.s32.totalorder 1, %s23
      %p242 = scmp.lt.s32.totalorder %s23, 3
      %p243 = pnand %p241, %p242
      %p244 = pneg %p243
      // Predicated region
      $region29: #{tpu_custom_call.1} parent=5 // pred_check
        _
      $region30: #{tpu_custom_call.1} parent=5 // pred_check_branch
        %246 = sbr.rel (%p243) target = $region32
      $region31: #{tpu_custom_call.1} parent=5 // pred_region
        %s247 = ssub.s32 %s23, 1
        %s248 = sand.u32 %s50, 1
        %s249 = scalar_lea.sflag [#allocation3], %s248
        %s250 = sand.u32 %s50, 1
        %s251 = smul.addr %s250, 8
        %s252 = scalar_lea.vmem [#allocation2], %s251
        // Predicated region
        $region33: #{tpu_custom_call.1} parent=31 // pred_check
          %p253 = pneg %p63
        $region34: #{tpu_custom_call.1} parent=31 // pred_check_branch
          %255 = sbr.rel (%p253) target = $region36
        $region35: #{tpu_custom_call.1} parent=31 // pred_region
          %256 = dma.done %s249, 128
        $region36: #{tpu_custom_call.1} parent=31 // pred_fallthru
          _
        %s257 = sand.u32 %s78, 1
        %s258 = scalar_lea.sflag [#allocation6], %s257
        %s259 = sand.u32 %s78, 1
        %s260 = smul.addr %s259, 2
        %s261 = scalar_lea.vmem [#allocation5], %s260
        // Predicated region
        $region37: #{tpu_custom_call.1} parent=31 // pred_check
          %p262 = pneg %p91
        $region38: #{tpu_custom_call.1} parent=31 // pred_check_branch
          %264 = sbr.rel (%p262) target = $region40
        $region39: #{tpu_custom_call.1} parent=31 // pred_region
          %265 = dma.done %s258, 32
        $region40: #{tpu_custom_call.1} parent=31 // pred_fallthru
          _
        %s266 = sand.u32 %s50, 1
        %s267 = scalar_lea.sflag [#allocation3], %s266
        %s268 = sand.u32 %s50, 1
        %s269 = smul.addr %s268, 8
        %s270 = scalar_lea.vmem [#allocation2], %s269
        %p271 = pneg %p63
        %p272 = pneg %p60
        %s273 = sand.u32 %s78, 1
        %s274 = scalar_lea.sflag [#allocation6], %s273
        %s275 = sand.u32 %s78, 1
        %s276 = smul.addr %s275, 2
        %s277 = scalar_lea.vmem [#allocation5], %s276
        %p278 = pneg %p91
        %p279 = pneg %p88
        %p280 = scmp.lt.s32.totalorder %s32, 1
        %s281 = scalar_select %p280, %s32, 1
        %p282 = scmp.lt.s32.totalorder %s33, 0
        %s283 = scalar_select %p282, %s33, 0
        %s284 = sadd.s32 %s283, %s281
        %s285 = smul.addr %s284, 2
        %s286 = scalar_lea.vmem %s2, %s285
        %p287 = pneg %p119
        %p288 = pneg %p116
        %p289 = pneg %p145
        %p290 = pneg %p142
        %s291 = sand.u32 %s132, 1
        %s292 = scalar_lea.sflag [#allocation4], %s291
        %s293 = sand.u32 %s132, 1
        %s294 = smul.addr %s293, 2
        %s295 = scalar_lea.vmem [#allocation7], %s294
        %p296 = pneg %p171
        %p297 = pneg %p168
        %s298 = sand.u32 %s158, 1
        %s299 = scalar_lea.sflag [#allocation9], %s298
        %s300 = sand.u32 %s158, 1
        %s301 = smul.addr %s300, 2
        %s302 = scalar_lea.vmem [#allocation8], %s301
        %p303 = scmp.lt.s32.totalorder %s32, 1
        %s304 = scalar_select %p303, %s32, 1
        %p305 = scmp.lt.s32.totalorder %s33, 0
        %s306 = scalar_select %p305, %s33, 0
        %s307 = sadd.s32 %s306, %s304
        %s308 = smul.addr %s307, 2
        %s309 = scalar_lea.vmem %s2, %s308
        %p310 = scmp.eq.s32.totalorder %s33, 0
        // Predicated region
        $region41: #{tpu_custom_call.1} parent=31 // pred_check
          %p311 = pneg %p310
        $region42: #{tpu_custom_call.1} parent=31 // pred_check_branch
          %313 = sbr.rel (%p311) target = $region44
        $region43: #{tpu_custom_call.1} parent=31 // pred_region
          %314 = vst [vmem:[%s295] sm:$0x3] 0.0
          %315 = vst [vmem:[%s302] sm:$0x3] 0.0
        $region44: #{tpu_custom_call.1} parent=31 // pred_fallthru
          _
        %v316 = vld [vmem:[%s252] sm:$0x3]
        %v317 = vld [vmem:[%s252 + $0x2] sm:$0x3]
        %v318 = vld [vmem:[%s252 + $0x4] sm:$0x3]
        %v319 = vld [vmem:[%s252 + $0x6] sm:$0x3]
        %v320 = vld [vmem:[%s261] sm:$0x3]
        %v321 = vld [vmem:[%s309] sm:$0x3]
        %vm322 = vcmask 1041408
        %v323 = vsel %vm322, %v316, 0.0
        %v324 = vsel %vm322, %v317, 0.0
        %v325 = vadd.f32 %v323, %v324
        %v326 = vsel %vm322, %v318, 0.0
        %v327 = vadd.f32 %v325, %v326
        %v328 = vsel %vm322, %v319, 0.0
        %v329 = vadd.f32 %v327, %v328
        %v330 = vsub.f32 %v320, %v321
        %v331 = vmul.f32 %v330, %v330
        %vm332 = vcmp.gt.f32.partialorder %v321, 0.0
        %v333 = vld [vmem:[%s295] sm:$0x3]
        %v334 = vmul.f32 %v331, %v329
        %v335 = vsel %vm332, %v334, 0.0
        %v336 = vadd.f32 %v333, %v335
        %337 = vst [vmem:[%s295] sm:$0x3] %v336
        %v338 = vld [vmem:[%s302] sm:$0x3]
        %v339 = vsel %vm332, 1.0, 0.0
        %v340 = vadd.f32 %v338, %v339
        %341 = vst [vmem:[%s302] sm:$0x3] %v340
        %s342 = sand.u32 %s132, 1
        %s343 = scalar_lea.sflag [#allocation4], %s342
        %s344 = sand.u32 %s132, 1
        %s345 = smul.addr %s344, 2
        %s346 = scalar_lea.vmem [#allocation7], %s345
        %s347 = sand.u32 %s158, 1
        %s348 = scalar_lea.sflag [#allocation9], %s347
        %s349 = sand.u32 %s158, 1
        %s350 = smul.addr %s349, 2
        %s351 = scalar_lea.vmem [#allocation8], %s350
        // Predicated region
        $region45: #{tpu_custom_call.1} parent=31 // pred_check
          %p352 = pneg %p142
        $region46: #{tpu_custom_call.1} parent=31 // pred_check_branch
          %354 = sbr.rel (%p352) target = $region48
        $region47: #{tpu_custom_call.1} parent=31 // pred_region
          %s356 = ssub.s32 32, 32
          %357 = vsyncadd %s343, %s356
          %s358 = smul.addr %s32, 32
          %s359 = scalar_lea.hbm %s3, %s358
          %s361 = sshll.u32 %s346, 4
          %s362 = int_to_ptr.vmem [resolvable:$true] %s361
          %364 = dma.vmem_to_hbm [thread:$0]  %s362, 32, %s359, %s343
        $region48: #{tpu_custom_call.1} parent=31 // pred_fallthru
          _
        // Predicated region
        $region49: #{tpu_custom_call.1} parent=31 // pred_check
          %p365 = pneg %p168
        $region50: #{tpu_custom_call.1} parent=31 // pred_check_branch
          %367 = sbr.rel (%p365) target = $region52
        $region51: #{tpu_custom_call.1} parent=31 // pred_region
          %s369 = ssub.s32 32, 32
          %370 = vsyncadd %s348, %s369
          %s371 = smul.addr %s32, 32
          %s372 = scalar_lea.hbm %s4, %s371
          %s374 = sshll.u32 %s351, 4
          %s375 = int_to_ptr.vmem [resolvable:$true] %s374
          %377 = dma.vmem_to_hbm [thread:$0]  %s375, 32, %s372, %s348
        $region52: #{tpu_custom_call.1} parent=31 // pred_fallthru
          _
      $region32: #{tpu_custom_call.1} parent=5 // pred_fallthru
        _
      %p378 = scmp.le.s32.totalorder 2, %s23
      // Predicated region
      $region53: #{tpu_custom_call.1} parent=5 // pred_check
        %p379 = pneg %p378
      $region54: #{tpu_custom_call.1} parent=5 // pred_check_branch
        %381 = sbr.rel (%p379) target = $region56
      $region55: #{tpu_custom_call.1} parent=5 // pred_region
        %s382 = ssub.s32 %s23, 2
        // Predicated region
        $region57: #{tpu_custom_call.1} parent=55 // pred_check
          %p383 = pneg %p148
        $region58: #{tpu_custom_call.1} parent=55 // pred_check_branch
          %385 = sbr.rel (%p383) target = $region60
        $region59: #{tpu_custom_call.1} parent=55 // pred_region
          %s386 = sand.u32 %s133, 1
          %s387 = scalar_lea.sflag [#allocation4], %s386
          %s388 = sand.u32 %s133, 1
          %s389 = smul.addr %s388, 2
          %s390 = scalar_lea.vmem [#allocation7], %s389
          %391 = dma.done %s387, 32
        $region60: #{tpu_custom_call.1} parent=55 // pred_fallthru
          _
        // Predicated region
        $region61: #{tpu_custom_call.1} parent=55 // pred_check
          %p392 = pneg %p174
        $region62: #{tpu_custom_call.1} parent=55 // pred_check_branch
          %394 = sbr.rel (%p392) target = $region64
        $region63: #{tpu_custom_call.1} parent=55 // pred_region
          %s395 = sand.u32 %s159, 1
          %s396 = scalar_lea.sflag [#allocation9], %s395
          %s397 = sand.u32 %s159, 1
          %s398 = smul.addr %s397, 2
          %s399 = scalar_lea.vmem [#allocation8], %s398
          %400 = dma.done %s396, 32
        $region64: #{tpu_custom_call.1} parent=55 // pred_fallthru
          _
      $region56: #{tpu_custom_call.1} parent=5 // pred_fallthru
        _
    $region6: #{tpu_custom_call.1} parent=1 // loop_footer
      %s27 = sadd.s32 1, %s23
    $region7: #{tpu_custom_call.1} parent=1 // loop_footer_branch
      %22 = sbr.rel target = $region3
    $region8: #{tpu_custom_call.1} parent=1 // loop_exit
      _
    %401 = vsyncpa [#allocation3], 1
    %s402 = scalar_lea.sflag [#allocation3], 1
    %403 = vsyncpa %s402, 1
    %404 = vsyncpa [#allocation6], 1
    %s405 = scalar_lea.sflag [#allocation6], 1
    %406 = vsyncpa %s405, 1
    %407 = vsyncpa [#allocation4], 1
    %s408 = scalar_lea.sflag [#allocation4], 1
    %409 = vsyncpa %s408, 1
    %410 = vsyncpa [#allocation9], 1
    %s411 = scalar_lea.sflag [#allocation9], 1
    %412 = vsyncpa %s411, 1

</llo_original>
